<compile_context>
chip_gen: v5e
topology: v5e:2x2
jax: 0.10.0
libtpu: 0.0.40
codegen_flags: <defaults>
</compile_context>

<pallas_src>
import functools

import jax
import jax.numpy as jnp
import numpy as np
from jax import lax
from jax.experimental import pallas as pl
from jax.experimental.pallas import tpu as pltpu

COLOR_RANGE = (-1.0, 1.0)  # color_range argument of the module ctor
# cfg.model.data_preprocessor.{mean,std} (standard ViTPose/ImageNet values)
MEAN = np.array([123.675, 116.28, 103.53], dtype=np.float32)
STD = np.array([58.395, 57.12, 57.375], dtype=np.float32)

LANES = 128


def _vmem_budget_and_limit():
    """(per-step double-buffered block budget, vmem_limit_bytes) per TPU gen."""
    try:
        kind = jax.devices()[0].device_kind.lower()
    except Exception:
        kind = ""
    if ("v4" in kind) or ("v5" in kind) or ("v6" in kind):
        # 128 MiB physical VMEM: big blocks amortize the ~0.35us per-step cost.
        return 32 << 20, 96 << 20
    # Conservative default: safe on v7x (64 MiB physical VMEM) and unknown gens.
    return 24 << 20, 48 << 20


def _choose_chunk(S):
    """Rows per in-kernel spatial chunk and the accumulator row count."""
    if S % 8 != 0:
        # Small / odd spatial slab: single (sublane-sparse) chunk, acc = (S,128).
        return S, S
    for c in (64, 56, 48, 40, 32, 24, 16, 8):
        if c <= S and S % c == 0:
            return c, 8
    return 8, 8


def _heatmap_loss_kernel(w_ref, b_ref, x_ref, hm_ref, out_ref,
                         *, nb, n_channels, n_keypoints, S, chunk):
    """One grid step: nb images -> one (acc_rows, 128) partial-SSE block.

    w_ref : SMEM (K, C)            preprocess-folded 1x1-conv weights
    b_ref : SMEM (K,)              preprocess-folded per-keypoint bias
    x_ref : VMEM (nb, C, S, 128)   input images (flattened spatial)
    hm_ref: VMEM (nb, K, S, 128)   target heatmaps (flattened spatial)
    out_ref: VMEM (1, acc_rows, 128) partial sum of squared errors
    """
    acc_rows = out_ref.shape[1]
    n_chunks = S // chunk

    # TODO(synk): the real frozen ViTPose backbone (checkpoint-loaded ViT) has
    # no clean Pallas equivalent; replaced by a deterministic 1x1-conv stand-in
    # (per-keypoint linear combination of preprocessed channels).

    def batch_body(b, acc):
        x_b = x_ref.at[b]    # (C, S, 128) view, no load
        hm_b = hm_ref.at[b]  # (K, S, 128) view, no load

        def chunk_body(s, acc):
            r0 = pl.multiple_of(s * chunk, chunk)
            # Load each channel chunk once and reuse it across all K keypoints
            # (chunk-outer / k-inner order minimizes vld traffic; the per-(k,c)
            #  SMEM scalar reads below ride the otherwise-idle scalar slot).
            chans = [x_b[c, pl.ds(r0, chunk), :].astype(jnp.float32)
                     for c in range(n_channels)]

            def k_body(k, acc):
                pred = chans[0] * w_ref[k, 0] + b_ref[k]
                for c in range(1, n_channels):
                    pred = pred + chans[c] * w_ref[k, c]
                diff = pred - hm_b[k, pl.ds(r0, chunk), :].astype(jnp.float32)
                sq = diff * diff
                if chunk != acc_rows:
                    # (chunk,128) -> (chunk//8, 8, 128): pure vreg regrouping,
                    # summed with VALU adds into a single-vreg accumulator.
                    sq = sq.reshape(chunk // acc_rows, acc_rows, LANES).sum(axis=0)
                return acc + sq

            return lax.fori_loop(0, n_keypoints, k_body, acc)

        return lax.fori_loop(0, n_chunks, chunk_body, acc)

    acc = jnp.zeros((acc_rows, LANES), jnp.float32)
    acc = lax.fori_loop(0, nb, batch_body, acc)
    out_ref[0] = acc


def heatmap_loss(heatmap, x, w, mean, std, color_range=COLOR_RANGE):
    N, C, H, W = x.shape
    Nh, K, Hh, Wh = heatmap.shape
    assert Nh == N and (Hh, Wh) == (H, W)
    HW = H * W
    assert HW % LANES == 0, "H*W must be a multiple of 128 (lane width)"
    S = HW // LANES

    lo, hi = color_range
    scale = 255.0 / (hi - lo)
    shift = -lo * scale

    mean = jnp.asarray(mean, jnp.float32)
    std = jnp.asarray(std, jnp.float32)
    w = jnp.asarray(w, jnp.float32)

    # Fold preprocess (range->[0,255] -> (x-mean)/std) into the 1x1 conv:
    #   pred_k = sum_c ((x_c*scale + shift - mean_c)/std_c) * w_kc
    #          = sum_c x_c * w'_kc + bias_k
    w_eff = w * (scale / std)[None, :]                           # (K, C)
    bias = jnp.sum(w * ((shift - mean) / std)[None, :], axis=1)  # (K,)

    # Lane-dense spatial layout (zero-copy reshape): (N, C, H, W) -> (N, C, S, 128)
    x4 = x.reshape(N, C, S, LANES)
    hm4 = heatmap.reshape(N, K, S, LANES)

    budget, vmem_limit = _vmem_budget_and_limit()
    per_image = S * LANES * (C * x.dtype.itemsize + K * heatmap.dtype.itemsize)
    nb = max(1, min(N, budget // (2 * per_image)))   # double-buffered blocks fit budget
    if N > 1:
        nb = min(nb, -(-N // 2))                     # keep >= 2 blocks (v7x dual-TC)
    num_blocks = -(-N // nb)
    N_pad = num_blocks * nb

    if N_pad != N:
        # Non-divisor batch: pad with zero images and bias-valued heatmaps so
        # that for padded pixels pred == bias == heatmap -> zero contribution.
        pad = N_pad - N
        x4 = jnp.concatenate(
            [x4, jnp.zeros((pad, C, S, LANES), x4.dtype)], axis=0)
        hm_fill = jnp.broadcast_to(
            bias.astype(hm4.dtype)[None, :, None, None], (pad, K, S, LANES))
        hm4 = jnp.concatenate([hm4, hm_fill], axis=0)

    chunk, acc_rows = _choose_chunk(S)

    kernel = functools.partial(
        _heatmap_loss_kernel,
        nb=nb, n_channels=C, n_keypoints=K, S=S, chunk=chunk)

    partials = pl.pallas_call(
        kernel,
        out_shape=jax.ShapeDtypeStruct((num_blocks, acc_rows, LANES), jnp.float32),
        grid=(num_blocks,),
        in_specs=[
            pl.BlockSpec(memory_space=pltpu.SMEM),                    # w_eff (K, C)
            pl.BlockSpec(memory_space=pltpu.SMEM),                    # bias  (K,)
            pl.BlockSpec((nb, C, S, LANES), lambda n: (n, 0, 0, 0)),  # images
            pl.BlockSpec((nb, K, S, LANES), lambda n: (n, 0, 0, 0)),  # heatmaps
        ],
        out_specs=pl.BlockSpec((1, acc_rows, LANES), lambda n: (n, 0, 0)),
        compiler_params=pltpu.CompilerParams(
            dimension_semantics=("parallel",),   # disjoint output block per step
            vmem_limit_bytes=vmem_limit,
        ),
    )(w_eff, bias, x4, hm4)

    # nn.MSELoss(reduction='mean'): tiny cross-lane reduction done in XLA,
    # normalized by the ORIGINAL element count (padding contributes exactly 0).
    total_elems = jnp.float32(N * K * HW)
    return jnp.sum(partials) / total_elems


def _reference_loss(heatmap, x, w, mean, std, color_range=COLOR_RANGE):
    lo, hi = color_range
    y = (x - lo) / (hi - lo) * 255.0
    y = (y - mean[None, :, None, None]) / std[None, :, None, None]
    pred = jnp.einsum('kc,nchw->nkhw', w, y)
    return jnp.mean((pred - heatmap) ** 2)


def _run_case(key, N, C, K, H, W):
    kx, kh, kw = jax.random.split(key, 3)
    x = jax.random.uniform(kx, (N, C, H, W), jnp.float32,
                           minval=COLOR_RANGE[0], maxval=COLOR_RANGE[1])
    heatmap = jax.random.normal(kh, (N, K, H, W), jnp.float32)
    w = jax.random.normal(kw, (K, C), jnp.float32) * 0.1  # deterministic stand-in
    mean = jnp.asarray(MEAN)
    std = jnp.asarray(STD)

    loss = jax.block_until_ready(heatmap_loss(heatmap, x, w, mean, std))
    ref = jax.block_until_ready(_reference_loss(heatmap, x, w, mean, std))
    np.testing.assert_allclose(np.asarray(loss), np.asarray(ref),
                               rtol=1e-3, atol=1e-3)


if __name__ == "__main__":
    key = jax.random.PRNGKey(0)
    k1, k2 = jax.random.split(key, 2)

    # Primary small case (batch=2, channels=3, spatial=16, 4 keypoint maps).
    _run_case(k1, N=2, C=3, K=4, H=16, W=16)

    # Exercises the non-divisor batch padding path, the chunked spatial
    # fori_loop and the (chunk//8, 8, 128) accumulator reduction.
    _run_case(k2, N=3, C=3, K=5, H=64, W=64)

    print("KERNEL_OK")
</pallas_src>

<mosaic_0001>
module attributes {stable_mosaic.version = 11 : i64} {
  func.func @_heatmap_loss_kernel(%arg0: i32, %arg1: memref<4x3xf32, #tpu.memory_space<smem>>, %arg2: memref<4xf32, #tpu.memory_space<smem>>, %arg3: memref<1x3x2x128xf32, #tpu.memory_space<vmem>>, %arg4: memref<1x4x2x128xf32, #tpu.memory_space<vmem>>, %arg5: memref<1x2x128xf32, #tpu.memory_space<vmem>>) attributes {dimension_semantics = [#tpu.dimension_semantics<parallel>], iteration_bounds = array<i64: 2>, scalar_prefetch = 0 : i64, scratch_operands = 0 : i64, tpu.core_type = #tpu.core_type<tc>, window_params = [{transform_indices = @transform_0, window_bounds = array<i64: 4, 3>}, {transform_indices = @transform_1, window_bounds = array<i64: 4>}, {transform_indices = @transform_2, window_bounds = array<i64: 1, 3, 2, 128>}, {transform_indices = @transform_3, window_bounds = array<i64: 1, 4, 2, 128>}, {transform_indices = @transform_4, window_bounds = array<i64: 1, 2, 128>}]} {
    %cst = arith.constant 0.000000e+00 : f32
    %0 = vector.broadcast %cst : f32 to vector<2x128xf32>
    %c0_i32 = arith.constant 0 : i32
    %c0_i32_0 = arith.constant 0 : i32
    %c2_i32 = arith.constant 2 : i32
    %1 = arith.muli %c0_i32_0, %c2_i32 : i32
    %2 = tpu.assume_multiple %1, 2 : i32
    %c0_i32_1 = arith.constant 0 : i32
    %c0_i32_2 = arith.constant 0 : i32
    %c0_i32_3 = arith.constant 0 : i32
    %3 = tpu.memref_slice %arg3[%c0_i32, %c0_i32_1, %c0_i32_2, %c0_i32_3] : memref<1x3x2x128xf32, #tpu.memory_space<vmem>> -> memref<1x3x2x128xf32, #tpu.memory_space<vmem>>
    %4 = tpu.memref_squeeze %3 : memref<1x3x2x128xf32, #tpu.memory_space<vmem>> -> memref<3x2x128xf32, #tpu.memory_space<vmem>>
    %c0 = arith.constant 0 : index
    %5 = arith.index_cast %2 : i32 to index
    %c0_4 = arith.constant 0 : index
    %6 = vector.load %4[%c0, %5, %c0_4] : memref<3x2x128xf32, #tpu.memory_space<vmem>>, vector<1x2x128xf32>
    %7 = vector.shape_cast %6 : vector<1x2x128xf32> to vector<2x128xf32>
    %c0_i32_5 = arith.constant 0 : i32
    %c0_i32_6 = arith.constant 0 : i32
    %c0_i32_7 = arith.constant 0 : i32
    %8 = tpu.memref_slice %arg3[%c0_i32, %c0_i32_5, %c0_i32_6, %c0_i32_7] : memref<1x3x2x128xf32, #tpu.memory_space<vmem>> -> memref<1x3x2x128xf32, #tpu.memory_space<vmem>>
    %9 = tpu.memref_squeeze %8 : memref<1x3x2x128xf32, #tpu.memory_space<vmem>> -> memref<3x2x128xf32, #tpu.memory_space<vmem>>
    %c1 = arith.constant 1 : index
    %10 = arith.index_cast %2 : i32 to index
    %c0_8 = arith.constant 0 : index
    %11 = vector.load %9[%c1, %10, %c0_8] : memref<3x2x128xf32, #tpu.memory_space<vmem>>, vector<1x2x128xf32>
    %12 = vector.shape_cast %11 : vector<1x2x128xf32> to vector<2x128xf32>
    %c0_i32_9 = arith.constant 0 : i32
    %c0_i32_10 = arith.constant 0 : i32
    %c0_i32_11 = arith.constant 0 : i32
    %13 = tpu.memref_slice %arg3[%c0_i32, %c0_i32_9, %c0_i32_10, %c0_i32_11] : memref<1x3x2x128xf32, #tpu.memory_space<vmem>> -> memref<1x3x2x128xf32, #tpu.memory_space<vmem>>
    %14 = tpu.memref_squeeze %13 : memref<1x3x2x128xf32, #tpu.memory_space<vmem>> -> memref<3x2x128xf32, #tpu.memory_space<vmem>>
    %c2 = arith.constant 2 : index
    %15 = arith.index_cast %2 : i32 to index
    %c0_12 = arith.constant 0 : index
    %16 = vector.load %14[%c2, %15, %c0_12] : memref<3x2x128xf32, #tpu.memory_space<vmem>>, vector<1x2x128xf32>
    %17 = vector.shape_cast %16 : vector<1x2x128xf32> to vector<2x128xf32>
    %c0_i32_13 = arith.constant 0 : i32
    %c4_i32 = arith.constant 4 : i32
    %18 = arith.addi %c0_i32_13, %c4_i32 : i32
    %c1_i32 = arith.constant 1 : i32
    %19 = scf.for %arg6 = %c0_i32_13 to %18 step %c1_i32 iter_args(%arg7 = %0) -> (vector<2x128xf32>)  : i32 {
      %23 = arith.index_cast %arg6 : i32 to index
      %c0_20 = arith.constant 0 : index
      %24 = memref.load %arg1[%23, %c0_20] : memref<4x3xf32, #tpu.memory_space<smem>>
      %25 = vector.broadcast %24 : f32 to vector<2x128xf32>
      %26 = arith.mulf %7, %25 : vector<2x128xf32>
      %27 = arith.index_cast %arg6 : i32 to index
      %28 = memref.load %arg2[%27] : memref<4xf32, #tpu.memory_space<smem>>
      %29 = vector.broadcast %28 : f32 to vector<2x128xf32>
      %30 = arith.addf %26, %29 : vector<2x128xf32>
      %31 = arith.index_cast %arg6 : i32 to index
      %c1_21 = arith.constant 1 : index
      %32 = memref.load %arg1[%31, %c1_21] : memref<4x3xf32, #tpu.memory_space<smem>>
      %33 = vector.broadcast %32 : f32 to vector<2x128xf32>
      %34 = arith.mulf %12, %33 : vector<2x128xf32>
      %35 = arith.addf %30, %34 : vector<2x128xf32>
      %36 = arith.index_cast %arg6 : i32 to index
      %c2_22 = arith.constant 2 : index
      %37 = memref.load %arg1[%36, %c2_22] : memref<4x3xf32, #tpu.memory_space<smem>>
      %38 = vector.broadcast %37 : f32 to vector<2x128xf32>
      %39 = arith.mulf %17, %38 : vector<2x128xf32>
      %40 = arith.addf %35, %39 : vector<2x128xf32>
      %c0_i32_23 = arith.constant 0 : i32
      %c0_i32_24 = arith.constant 0 : i32
      %c0_i32_25 = arith.constant 0 : i32
      %41 = tpu.memref_slice %arg4[%c0_i32, %c0_i32_23, %c0_i32_24, %c0_i32_25] : memref<1x4x2x128xf32, #tpu.memory_space<vmem>> -> memref<1x4x2x128xf32, #tpu.memory_space<vmem>>
      %42 = tpu.memref_squeeze %41 : memref<1x4x2x128xf32, #tpu.memory_space<vmem>> -> memref<4x2x128xf32, #tpu.memory_space<vmem>>
      %43 = arith.index_cast %arg6 : i32 to index
      %44 = arith.index_cast %2 : i32 to index
      %c0_26 = arith.constant 0 : index
      %45 = vector.load %42[%43, %44, %c0_26] : memref<4x2x128xf32, #tpu.memory_space<vmem>>, vector<1x2x128xf32>
      %46 = vector.shape_cast %45 : vector<1x2x128xf32> to vector<2x128xf32>
      %47 = arith.subf %40, %46 : vector<2x128xf32>
      %48 = arith.mulf %47, %47 : vector<2x128xf32>
      %49 = arith.addf %arg7, %48 : vector<2x128xf32>
      scf.yield %49 : vector<2x128xf32>
    }
    %c4_i32_14 = arith.constant 4 : i32
    %c1_i32_15 = arith.constant 1 : i32
    %c1_i32_16 = arith.constant 1 : i32
    %c0_17 = arith.constant 0 : index
    %c0_18 = arith.constant 0 : index
    %c0_19 = arith.constant 0 : index
    %20 = vector.load %arg5[%c0_17, %c0_18, %c0_19] : memref<1x2x128xf32, #tpu.memory_space<vmem>>, vector<1x2x128xf32>
    %21 = vector.shape_cast %20 : vector<1x2x128xf32> to vector<2x128xf32>
    %22 = vector.shape_cast %19 : vector<2x128xf32> to vector<1x2x128xf32>
    tpu.vector_store %arg5[%c0_17, %c0_18, %c0_19], %22 {strides = array<i32>} : memref<1x2x128xf32, #tpu.memory_space<vmem>>, vector<1x2x128xf32>,
    return
  }
  func.func @transform_0(%arg0: i32) -> (i32, i32) {
    %c0_i32 = arith.constant 0 : i32
    %c0_i32_0 = arith.constant 0 : i32
    %c0_i32_1 = arith.constant 0 : i32
    return %c0_i32, %c0_i32_0 : i32, i32
  }
  func.func @transform_1(%arg0: i32) -> i32 {
    %c0_i32 = arith.constant 0 : i32
    %c0_i32_0 = arith.constant 0 : i32
    return %c0_i32 : i32
  }
  func.func @transform_2(%arg0: i32) -> (i32, i32, i32, i32) {
    %c0_i32 = arith.constant 0 : i32
    %c0_i32_0 = arith.constant 0 : i32
    %c0_i32_1 = arith.constant 0 : i32
    %c0_i32_2 = arith.constant 0 : i32
    return %arg0, %c0_i32, %c0_i32_0, %c0_i32_1 : i32, i32, i32, i32
  }
  func.func @transform_3(%arg0: i32) -> (i32, i32, i32, i32) {
    %c0_i32 = arith.constant 0 : i32
    %c0_i32_0 = arith.constant 0 : i32
    %c0_i32_1 = arith.constant 0 : i32
    %c0_i32_2 = arith.constant 0 : i32
    return %arg0, %c0_i32, %c0_i32_0, %c0_i32_1 : i32, i32, i32, i32
  }
  func.func @transform_4(%arg0: i32) -> (i32, i32, i32) {
    %c0_i32 = arith.constant 0 : i32
    %c0_i32_0 = arith.constant 0 : i32
    %c0_i32_1 = arith.constant 0 : i32
    return %arg0, %c0_i32, %c0_i32_0 : i32, i32, i32
  }
}

</mosaic_0001>

<llo_original>
// kernel: tpu_custom_call.1
$region0: #{tpu_custom_call.1}
  #allocation0 [shape = 'u32[]', space=smem, size = 0x4, offset = 0x4, fixed_abs, tag = 'smem constant byte address 0x4 - core index']
  #allocation1 [shape = 'u32[72,128]{1,0:T(1,128)}', space=vmem, size = 0x9000, scoped, tag = 'internal scratch']
  %s0 = inlined_call_operand.hbm [shape: f32[4,3], index: 0, kind: input, shape index: {}]
  %s1 = inlined_call_operand.hbm [shape: f32[4], index: 1, kind: input, shape index: {}]
  %s2 = inlined_call_operand.hbm [shape: f32[2,3,2,128], index: 2, kind: input, shape index: {}]
  %s3 = inlined_call_operand.hbm [shape: f32[2,4,2,128], index: 3, kind: input, shape index: {}]
  %s4 = inlined_call_operand.hbm [shape: f32[2,2,128], index: 4, kind: output, shape index: {}]
  %s5 = sld [smem:[#allocation0]]
  $region72: #{tpu_custom_call.1} parent=0
    _
  %s7 = ssub.s32 1, %s5
  %s8 = scalar_select 0, %s7, %s5
  $region1: #{tpu_custom_call.1} parent=0
    #allocation2 [shape = 'u8[2048]{0}', space=smem, size = 0x800, scoped, tag = 'input window, operand 0, single buffered']
    #allocation3 [shape = 's32[2]{0}', space=sflag, size = 0x8, scoped, tag = 'scoped memory for tpu_custom_call.1']
    #allocation4 [shape = 's32[2]{0}', space=sflag, size = 0x8, scoped, tag = 'scoped memory for tpu_custom_call.1']
    #allocation5 [shape = 's32[2]{0}', space=sflag, size = 0x8, scoped, tag = 'scoped memory for tpu_custom_call.1']
    #allocation6 [shape = 'u8[512]{0}', space=smem, size = 0x200, scoped, tag = 'input window, operand 1, single buffered']
    #allocation7 [shape = 's32[1]{0}', space=sflag, size = 0x4, scoped, tag = 'scoped memory for tpu_custom_call.1']
    #allocation8 [shape = 'u8[6144]{0}', space=vmem, size = 0x1800, scoped, tag = 'input window, operand 2']
    #allocation9 [shape = 'u8[8192]{0}', space=vmem, size = 0x2000, scoped, tag = 'input window, operand 3']
    #allocation10 [shape = 's32[2]{0}', space=sflag, size = 0x8, scoped, tag = 'scoped memory for tpu_custom_call.1']
    #allocation11 [shape = 'u8[2048]{0}', space=vmem, size = 0x800, scoped, tag = 'output window, operand 0']
    %9 = vsyncpa [#allocation5], 0
    %10 = vsyncpa [#allocation7], 0
    %11 = vsyncpa [#allocation3], 0
    %s12 = scalar_lea.sflag [#allocation3], 1
    %13 = vsyncpa %s12, 0
    %14 = vsyncpa [#allocation10], 0
    %s15 = scalar_lea.sflag [#allocation10], 1
    %16 = vsyncpa %s15, 0
    %17 = vsyncpa [#allocation4], 0
    %s18 = scalar_lea.sflag [#allocation4], 1
    %19 = vsyncpa %s18, 0
    loop: start=0, step=1, limit=4
    $region2: #{tpu_custom_call.1} parent=1 // loop_pre_header
      _
    $region3: #{tpu_custom_call.1} parent=1 // loop_header
      %s21 = sphi 0, %s25
      %p22 = scmp.ge.s32.totalorder %s21, 4
      %s29 = sphi 0, %s29
      %s31 = sphi 0, %s29
      %s32 = sphi 0, %s31
      %s46 = sphi 0, %s32
      %s50 = sphi 0, %s50
      %s52 = sphi 0, %s50
      %s53 = sphi 0, %s52
      %s67 = sphi 0, %s53
      %s73 = sphi 0, %s75
      %s76 = sphi 0, %s73
      %s77 = sphi 0, %s76
      %s93 = sphi 0, %s77
      %s99 = sphi 0, %s101
      %s102 = sphi 0, %s99
      %s103 = sphi 0, %s102
      %s119 = sphi 0, %s103
      %s125 = sphi 0, %s127
      %s128 = sphi 0, %s125
      %s129 = sphi 0, %s128
      %s145 = sphi 0, %s129
    $region4: #{tpu_custom_call.1} parent=1 // loop_header_branch
      %24 = sbr.rel (%p22) target = $region8
    $region5: #{tpu_custom_call.1} parent=1 // loop_body
      %s26 = ssub.s32 %s21, 1
      %s27 = ssub.s32 %s21, 2
      %s28 = sadd.s32 %s21, 1
      %s30 = sadd.s32 %s29, 1
      %p33 = scmp.eq.s32.totalorder %s21, 1
      %p34 = scmp.ne.s32.totalorder %s29, %s31
      %p35 = scmp.eq.s32.totalorder %s21, 0
      %p36 = por %p34, %p35
      %p37 = scmp.ne.s32.totalorder %s29, %s31
      %p38 = scmp.eq.s32.totalorder %s26, 1
      %p39 = por %p37, %p38
      %p40 = scmp.ne.s32.totalorder %s31, %s32
      %p41 = scmp.eq.s32.totalorder %s26, 0
      %p42 = por %p40, %p41
      %p43 = scmp.ne.s32.totalorder %s31, %s32
      %p44 = scmp.eq.s32.totalorder %s27, 1
      %p45 = por %p43, %p44
      %p47 = scmp.ne.s32.totalorder %s32, %s46
      %p48 = scmp.eq.s32.totalorder %s27, 0
      %p49 = por %p47, %p48
      %s51 = sadd.s32 %s50, 1
      %p54 = scmp.eq.s32.totalorder %s21, 1
      %p55 = scmp.ne.s32.totalorder %s50, %s52
      %p56 = scmp.eq.s32.totalorder %s21, 0
      %p57 = por %p55, %p56
      %p58 = scmp.ne.s32.totalorder %s50, %s52
      %p59 = scmp.eq.s32.totalorder %s26, 1
      %p60 = por %p58, %p59
      %p61 = scmp.ne.s32.totalorder %s52, %s53
      %p62 = scmp.eq.s32.totalorder %s26, 0
      %p63 = por %p61, %p62
      %p64 = scmp.ne.s32.totalorder %s52, %s53
      %p65 = scmp.eq.s32.totalorder %s27, 1
      %p66 = por %p64, %p65
      %p68 = scmp.ne.s32.totalorder %s53, %s67
      %p69 = scmp.eq.s32.totalorder %s27, 0
      %p70 = por %p68, %p69
      %s71 = ssub.s32 %s21, %s28
      %p72 = scmp.eq.s32.totalorder %s71, 0
      %s74 = sadd.s32 %s73, 1
      %s75 = scalar_select %p72, %s73, %s74
      %p78 = pneg %p72
      %p79 = scmp.eq.s32.totalorder %s21, 1
      %p80 = por %p78, %p79
      %p81 = scmp.ne.s32.totalorder %s73, %s76
      %p82 = scmp.eq.s32.totalorder %s21, 0
      %p83 = por %p81, %p82
      %p84 = scmp.ne.s32.totalorder %s73, %s76
      %p85 = scmp.eq.s32.totalorder %s26, 1
      %p86 = por %p84, %p85
      %p87 = scmp.ne.s32.totalorder %s76, %s77
      %p88 = scmp.eq.s32.totalorder %s26, 0
      %p89 = por %p87, %p88
      %p90 = scmp.ne.s32.totalorder %s76, %s77
      %p91 = scmp.eq.s32.totalorder %s27, 1
      %p92 = por %p90, %p91
      %p94 = scmp.ne.s32.totalorder %s77, %s93
      %p95 = scmp.eq.s32.totalorder %s27, 0
      %p96 = por %p94, %p95
      %s97 = ssub.s32 %s21, %s28
      %p98 = scmp.eq.s32.totalorder %s97, 0
      %s100 = sadd.s32 %s99, 1
      %s101 = scalar_select %p98, %s99, %s100
      %p104 = pneg %p98
      %p105 = scmp.eq.s32.totalorder %s21, 1
      %p106 = por %p104, %p105
      %p107 = scmp.ne.s32.totalorder %s99, %s102
      %p108 = scmp.eq.s32.totalorder %s21, 0
      %p109 = por %p107, %p108
      %p110 = scmp.ne.s32.totalorder %s99, %s102
      %p111 = scmp.eq.s32.totalorder %s26, 1
      %p112 = por %p110, %p111
      %p113 = scmp.ne.s32.totalorder %s102, %s103
      %p114 = scmp.eq.s32.totalorder %s26, 0
      %p115 = por %p113, %p114
      %p116 = scmp.ne.s32.totalorder %s102, %s103
      %p117 = scmp.eq.s32.totalorder %s27, 1
      %p118 = por %p116, %p117
      %p120 = scmp.ne.s32.totalorder %s103, %s119
      %p121 = scmp.eq.s32.totalorder %s27, 0
      %p122 = por %p120, %p121
      %s123 = ssub.s32 %s21, %s28
      %p124 = scmp.eq.s32.totalorder %s123, 0
      %s126 = sadd.s32 %s125, 1
      %s127 = scalar_select %p124, %s125, %s126
      %p130 = pneg %p124
      %p131 = scmp.eq.s32.totalorder %s21, 1
      %p132 = por %p130, %p131
      %p133 = scmp.ne.s32.totalorder %s125, %s128
      %p134 = scmp.eq.s32.totalorder %s21, 0
      %p135 = por %p133, %p134
      %p136 = scmp.ne.s32.totalorder %s125, %s128
      %p137 = scmp.eq.s32.totalorder %s26, 1
      %p138 = por %p136, %p137
      %p139 = scmp.ne.s32.totalorder %s128, %s129
      %p140 = scmp.eq.s32.totalorder %s26, 0
      %p141 = por %p139, %p140
      %p142 = scmp.ne.s32.totalorder %s128, %s129
      %p143 = scmp.eq.s32.totalorder %s27, 1
      %p144 = por %p142, %p143
      %p146 = scmp.ne.s32.totalorder %s129, %s145
      %p147 = scmp.eq.s32.totalorder %s27, 0
      %p148 = por %p146, %p147
      %p149 = scmp.le.s32.totalorder 1, %s21
      %p150 = scmp.lt.s32.totalorder %s21, 3
      %p151 = pnand %p149, %p150
      %p152 = pneg %p151
      // Predicated region
      $region9: #{tpu_custom_call.1} parent=5 // pred_check
        _
      $region10: #{tpu_custom_call.1} parent=5 // pred_check_branch
        %154 = sbr.rel (%p151) target = $region12
      $region11: #{tpu_custom_call.1} parent=5 // pred_region
        %s155 = ssub.s32 %s21, 1
        // Predicated region
        $region13: #{tpu_custom_call.1} parent=11 // pred_check
          %p156 = pneg %p42
        $region14: #{tpu_custom_call.1} parent=11 // pred_check_branch
          %158 = sbr.rel (%p156) target = $region16
        $region15: #{tpu_custom_call.1} parent=11 // pred_region
          %160 = vsyncadd [#allocation5], 0
          %s162 = sshll.u32 %s0, 4
          %s163 = int_to_ptr.hbm [resolvable:$true] %s162
          %165 = dma.hbm_to_smem %s163, 64, [#allocation2], [#allocation5]
        $region16: #{tpu_custom_call.1} parent=11 // pred_fallthru
          _
        // Predicated region
        $region17: #{tpu_custom_call.1} parent=11 // pred_check
          %p166 = pneg %p63
        $region18: #{tpu_custom_call.1} parent=11 // pred_check_branch
          %168 = sbr.rel (%p166) target = $region20
        $region19: #{tpu_custom_call.1} parent=11 // pred_region
          %170 = vsyncadd [#allocation7], 0
          %s172 = sshll.u32 %s1, 4
          %s173 = int_to_ptr.hbm [resolvable:$true] %s172
          %175 = dma.hbm_to_smem %s173, 16, [#allocation6], [#allocation7]
        $region20: #{tpu_custom_call.1} parent=11 // pred_fallthru
          _
      $region12: #{tpu_custom_call.1} parent=5 // pred_fallthru
        _
      %p176 = scmp.lt.s32.totalorder %s21, 2
      // Predicated region
      $region21: #{tpu_custom_call.1} parent=5 // pred_check
        %p177 = pneg %p176
      $region22: #{tpu_custom_call.1} parent=5 // pred_check_branch
        %179 = sbr.rel (%p177) target = $region24
      $region23: #{tpu_custom_call.1} parent=5 // pred_region
        // Predicated region
        $region25: #{tpu_custom_call.1} parent=23 // pred_check
          %p180 = pneg %p83
        $region26: #{tpu_custom_call.1} parent=23 // pred_check_branch
          %182 = sbr.rel (%p180) target = $region28
        $region27: #{tpu_custom_call.1} parent=23 // pred_region
          %s183 = sand.u32 %s73, 1
          %s184 = scalar_lea.sflag [#allocation3], %s183
          %s185 = sand.u32 %s73, 1
          %s186 = smul.addr %s185, 6
          %s187 = scalar_lea.vmem [#allocation8], %s186
          %189 = vsyncadd %s184, 0
          %s190 = smul.addr %s21, 3
          %s191 = smul.addr %s190, 2
          %s192 = scalar_lea.hbm %s2, %s191
          %s193 = sshll.u32 %s192, 4
          %s194 = int_to_ptr.hbm [resolvable:$true] %s193
          %s195 = sshll.u32 %s187, 4
          %s196 = int_to_ptr.vmem [resolvable:$true] %s195
          %201 = dma.hbm_to_vmem [thread:$0]  %s194, 96, %s196, %s184, 32, 32, 2
        $region28: #{tpu_custom_call.1} parent=23 // pred_fallthru
          _
        // Predicated region
        $region29: #{tpu_custom_call.1} parent=23 // pred_check
          %p202 = pneg %p109
        $region30: #{tpu_custom_call.1} parent=23 // pred_check_branch
          %204 = sbr.rel (%p202) target = $region32
        $region31: #{tpu_custom_call.1} parent=23 // pred_region
          %s205 = sand.u32 %s99, 1
          %s206 = scalar_lea.sflag [#allocation10], %s205
          %s207 = sand.u32 %s99, 1
          %s208 = smul.addr %s207, 8
          %s209 = scalar_lea.vmem [#allocation9], %s208
          %211 = vsyncadd %s206, 0
          %s212 = smul.addr %s21, 4
          %s213 = smul.addr %s212, 2
          %s214 = scalar_lea.hbm %s3, %s213
          %s215 = sshll.u32 %s214, 4
          %s216 = int_to_ptr.hbm [resolvable:$true] %s215
          %s217 = sshll.u32 %s209, 4
          %s218 = int_to_ptr.vmem [resolvable:$true] %s217
          %223 = dma.hbm_to_vmem [thread:$0]  %s216, 128, %s218, %s206, 32, 32, 2
        $region32: #{tpu_custom_call.1} parent=23 // pred_fallthru
          _
      $region24: #{tpu_custom_call.1} parent=5 // pred_fallthru
        _
      %p224 = scmp.le.s32.totalorder 1, %s21
      %p225 = scmp.lt.s32.totalorder %s21, 3
      %p226 = pnand %p224, %p225
      %p227 = pneg %p226
      // Predicated region
      $region33: #{tpu_custom_call.1} parent=5 // pred_check
        _
      $region34: #{tpu_custom_call.1} parent=5 // pred_check_branch
        %229 = sbr.rel (%p226) target = $region36
      $region35: #{tpu_custom_call.1} parent=5 // pred_region
        %s230 = ssub.s32 %s21, 1
        // Predicated region
        $region37: #{tpu_custom_call.1} parent=35 // pred_check
          %p231 = pneg %p42
        $region38: #{tpu_custom_call.1} parent=35 // pred_check_branch
          %233 = sbr.rel (%p231) target = $region40
        $region39: #{tpu_custom_call.1} parent=35 // pred_region
          %235 = dma.done [#allocation5], 64
        $region40: #{tpu_custom_call.1} parent=35 // pred_fallthru
          _
        // Predicated region
        $region41: #{tpu_custom_call.1} parent=35 // pred_check
          %p236 = pneg %p63
        $region42: #{tpu_custom_call.1} parent=35 // pred_check_branch
          %238 = sbr.rel (%p236) target = $region44
        $region43: #{tpu_custom_call.1} parent=35 // pred_region
          %240 = dma.done [#allocation7], 16
        $region44: #{tpu_custom_call.1} parent=35 // pred_fallthru
          _
        %s241 = sand.u32 %s76, 1
        %s242 = scalar_lea.sflag [#allocation3], %s241
        %s243 = sand.u32 %s76, 1
        %s244 = smul.addr %s243, 6
        %s245 = scalar_lea.vmem [#allocation8], %s244
        // Predicated region
        $region45: #{tpu_custom_call.1} parent=35 // pred_check
          %p246 = pneg %p89
        $region46: #{tpu_custom_call.1} parent=35 // pred_check_branch
          %248 = sbr.rel (%p246) target = $region48
        $region47: #{tpu_custom_call.1} parent=35 // pred_region
          %250 = dma.done %s242, 96
        $region48: #{tpu_custom_call.1} parent=35 // pred_fallthru
          _
        %s251 = sand.u32 %s102, 1
        %s252 = scalar_lea.sflag [#allocation10], %s251
        %s253 = sand.u32 %s102, 1
        %s254 = smul.addr %s253, 8
        %s255 = scalar_lea.vmem [#allocation9], %s254
        // Predicated region
        $region49: #{tpu_custom_call.1} parent=35 // pred_check
          %p256 = pneg %p115
        $region50: #{tpu_custom_call.1} parent=35 // pred_check_branch
          %258 = sbr.rel (%p256) target = $region52
        $region51: #{tpu_custom_call.1} parent=35 // pred_region
          %260 = dma.done %s252, 128
        $region52: #{tpu_custom_call.1} parent=35 // pred_fallthru
          _
        %261 = sfence
        %p262 = pneg %p42
        %p263 = pneg %p39
        %p264 = pneg %p63
        %p265 = pneg %p60
        %s266 = sand.u32 %s76, 1
        %s267 = scalar_lea.sflag [#allocation3], %s266
        %s268 = sand.u32 %s76, 1
        %s269 = smul.addr %s268, 6
        %s270 = scalar_lea.vmem [#allocation8], %s269
        %p271 = pneg %p89
        %p272 = pneg %p86
        %s273 = sand.u32 %s102, 1
        %s274 = scalar_lea.sflag [#allocation10], %s273
        %s275 = sand.u32 %s102, 1
        %s276 = smul.addr %s275, 8
        %s277 = scalar_lea.vmem [#allocation9], %s276
        %p278 = pneg %p115
        %p279 = pneg %p112
        %p280 = pneg %p141
        %p281 = pneg %p138
        %s282 = sand.u32 %s128, 1
        %s283 = scalar_lea.sflag [#allocation4], %s282
        %s284 = sand.u32 %s128, 1
        %s285 = smul.addr %s284, 2
        %s286 = scalar_lea.vmem [#allocation11], %s285
        %v287 = vld [vmem:[%s245] sm:$0x3]
        %s288 = sadd.s32 0, 2
        %s289 = scalar_lea.vmem %s245, %s288 [#allocation8]
        %v290 = vld [vmem:[%s289] sm:$0x3]
        %s291 = sadd.s32 0, 4
        %s292 = scalar_lea.vmem %s245, %s291 [#allocation8]
        %v293 = vld [vmem:[%s292] sm:$0x3]
        loop: start=0, step=1, limit=4
        $region53: #{tpu_custom_call.1} parent=35 // loop_pre_header
          _
        $region54: #{tpu_custom_call.1} parent=35 // loop_header
          %s295 = sphi 0, %s299
          %p296 = scmp.ge.s32.totalorder %s295, 4
          %v300 = vphi 0.0, %v324
        $region55: #{tpu_custom_call.1} parent=35 // loop_header_branch
          %298 = sbr.rel (%p296) target = $region59
        $region56: #{tpu_custom_call.1} parent=35 // loop_body
          %s301 = smul.u32 %s295, 128
          %s302 = sld [smem:[#allocation2 + %s301]]
          %v303 = vstv %s302
          %v304 = vmul.f32 %v287, %v303
          %s305 = sld [smem:[#allocation6 + %s295]]
          %v306 = vstv %s305
          %v307 = vadd.f32 %v304, %v306
          %s308 = sadd.s32 %s301, 1
          %s309 = sld [smem:[#allocation2 + %s308]]
          %v310 = vstv %s309
          %v311 = vmul.f32 %v290, %v310
          %v312 = vadd.f32 %v307, %v311
          %s313 = sadd.s32 %s301, 2
          %s314 = sld [smem:[#allocation2 + %s313]]
          %v315 = vstv %s314
          %v316 = vmul.f32 %v293, %v315
          %v317 = vadd.f32 %v312, %v316
          %s318 = smul.u32 %s295, 2
          %s319 = sadd.s32 0, %s318
          %s320 = scalar_lea.vmem %s255, %s319 [#allocation9]
          %v321 = vld [vmem:[%s320] sm:$0x3]
          %v322 = vsub.f32 %v317, %v321
          %v323 = vmul.f32 %v322, %v322
          %v324 = vadd.f32 %v300, %v323
        $region57: #{tpu_custom_call.1} parent=35 // loop_footer
          %s299 = sadd.s32 1, %s295
        $region58: #{tpu_custom_call.1} parent=35 // loop_footer_branch
          %294 = sbr.rel target = $region54
        $region59: #{tpu_custom_call.1} parent=35 // loop_exit
          _
        %325 = vst [vmem:[%s286] sm:$0x3] %v300
        %s326 = sand.u32 %s128, 1
        %s327 = scalar_lea.sflag [#allocation4], %s326
        %s328 = sand.u32 %s128, 1
        %s329 = smul.addr %s328, 2
        %s330 = scalar_lea.vmem [#allocation11], %s329
        // Predicated region
        $region60: #{tpu_custom_call.1} parent=35 // pred_check
          %p331 = pneg %p138
        $region61: #{tpu_custom_call.1} parent=35 // pred_check_branch
          %333 = sbr.rel (%p331) target = $region63
        $region62: #{tpu_custom_call.1} parent=35 // pred_region
          %335 = vsyncadd %s327, 0
          %s336 = smul.addr %s26, 2
          %s337 = scalar_lea.hbm %s4, %s336
          %s339 = sshll.u32 %s330, 4
          %s340 = int_to_ptr.vmem [resolvable:$true] %s339
          %s341 = sshll.u32 %s337, 4
          %s342 = int_to_ptr.hbm [resolvable:$true] %s341
          %344 = dma.vmem_to_hbm [thread:$0]  %s340, 32, %s342, %s327
        $region63: #{tpu_custom_call.1} parent=35 // pred_fallthru
          _
      $region36: #{tpu_custom_call.1} parent=5 // pred_fallthru
        _
      %p345 = scmp.le.s32.totalorder 2, %s21
      // Predicated region
      $region64: #{tpu_custom_call.1} parent=5 // pred_check
        %p346 = pneg %p345
      $region65: #{tpu_custom_call.1} parent=5 // pred_check_branch
        %348 = sbr.rel (%p346) target = $region67
      $region66: #{tpu_custom_call.1} parent=5 // pred_region
        %s349 = ssub.s32 %s21, 2
        // Predicated region
        $region68: #{tpu_custom_call.1} parent=66 // pred_check
          %p350 = pneg %p144
        $region69: #{tpu_custom_call.1} parent=66 // pred_check_branch
          %352 = sbr.rel (%p350) target = $region71
        $region70: #{tpu_custom_call.1} parent=66 // pred_region
          %s353 = sand.u32 %s129, 1
          %s354 = scalar_lea.sflag [#allocation4], %s353
          %s355 = sand.u32 %s129, 1
          %s356 = smul.addr %s355, 2
          %s357 = scalar_lea.vmem [#allocation11], %s356
          %359 = dma.done %s354, 32
        $region71: #{tpu_custom_call.1} parent=66 // pred_fallthru
          _
      $region67: #{tpu_custom_call.1} parent=5 // pred_fallthru
        _
    $region6: #{tpu_custom_call.1} parent=1 // loop_footer
      %s25 = sadd.s32 1, %s21
    $region7: #{tpu_custom_call.1} parent=1 // loop_footer_branch
      %20 = sbr.rel target = $region3
    $region8: #{tpu_custom_call.1} parent=1 // loop_exit
      _
    %360 = vsyncpa [#allocation3], 1
    %s361 = scalar_lea.sflag [#allocation3], 1
    %362 = vsyncpa %s361, 1
    %363 = vsyncpa [#allocation10], 1
    %s364 = scalar_lea.sflag [#allocation10], 1
    %365 = vsyncpa %s364, 1
    %366 = vsyncpa [#allocation4], 1
    %s367 = scalar_lea.sflag [#allocation4], 1
    %368 = vsyncpa %s367, 1
    %369 = vsyncpa [#allocation5], 1
    %s370 = scalar_lea.sflag [#allocation5], 1
    %371 = vsyncpa %s370, 1
    %372 = vsyncpa [#allocation7], 1

</llo_original>
